<compile_context>
chip_gen: v7x
topology: tpu7x:2x2x1
jax: 0.10.0
libtpu: 0.0.40
codegen_flags: <defaults>
</compile_context>

<pallas_src>
import math
import functools

import jax
import jax.numpy as jnp
from jax.experimental import pallas as pl
from jax.experimental.pallas import tpu as pltpu


# ---------------------------------------------------------------------------
# Kernels
# ---------------------------------------------------------------------------
def _posenc_eval_kernel(x_ref, pe_ref, o_ref):
    # x_ref / o_ref: (TB, TR, LANE); pe_ref: (TR, LANE) broadcast over batch.
    o_ref[...] = x_ref[...] + pe_ref[...][None, :, :]


def _posenc_train_kernel(seed_ref, x_ref, pe_ref, o_ref, *,
                         keep_threshold: int, inv_keep: float,
                         rows: int, lane: int,
                         tile_rows: int, tile_batch: int):
    # y = x + pe (same dtype as x; no f32 upcast needed for an O(1) add).
    y = x_ref[...] + pe_ref[...][None, :, :]

    # --- counter-based PRNG (portable integer ops; no pltpu.prng_*) ----------
    # Deterministic per-element regardless of tiling; VPU-only, hidden under
    # the HBM-bound streaming of x/out.
    s = pl.program_id(0)          # row-tile index   (outer grid axis)
    b = pl.program_id(1)          # batch-tile index (inner grid axis)

    local_b = jax.lax.broadcasted_iota(jnp.int32, y.shape, 0)
    local_row = jax.lax.broadcasted_iota(jnp.int32, y.shape, 1)
    local_lane = jax.lax.broadcasted_iota(jnp.int32, y.shape, 2)
    global_b = b * tile_batch + local_b
    global_row = s * tile_rows + local_row
    # Unique flat element index in the (batch, rows, lane) array (wraps mod 2^32
    # for enormous inputs, which is fine for hashing purposes).
    elem = (global_b * rows + global_row) * lane + local_lane

    k = elem.astype(jnp.uint32) ^ (
        seed_ref[0].astype(jnp.uint32) * jnp.uint32(0x9E3779B9))
    # murmur3 finalizer (avalanche) — uniform-ish 32-bit output.
    k = k ^ (k >> 16)
    k = k * jnp.uint32(0x85EBCA6B)
    k = k ^ (k >> 13)
    k = k * jnp.uint32(0xC2B2AE35)
    k = k ^ (k >> 16)

    # Inverted dropout with an integer threshold: P(keep) = 1 - rate.
    keep = k >= jnp.uint32(keep_threshold)
    scale = jnp.asarray(inv_keep, dtype=y.dtype)
    o_ref[...] = jnp.where(keep, y * scale, jnp.zeros_like(y))


# ---------------------------------------------------------------------------
# Helpers
# ---------------------------------------------------------------------------
def make_sinusoidal_pe(d_model: int, max_len: int = 5000, dtype=jnp.float32):
    position = jnp.arange(max_len, dtype=jnp.float32)[:, None]            # (max_len, 1)
    div_term = jnp.exp(jnp.arange(0, d_model, 2, dtype=jnp.float32)
                       * (-math.log(10000.0) / d_model))                  # (d_model//2,)
    pe = jnp.zeros((max_len, d_model), dtype=jnp.float32)
    pe = pe.at[:, 0::2].set(jnp.sin(position * div_term))
    pe = pe.at[:, 1::2].set(jnp.cos(position * div_term))
    return pe.astype(dtype)


def _fold_lane_dense(seq: int, d: int):
    """Fold (seq, d) -> (rows, lane) with a lane-dense (multiple-of-128) last
    dim whenever possible. Pure row-major reshape, so elementwise semantics
    (and per-row PE addition) are preserved."""
    if d % 128 == 0:
        return seq, d
    total = seq * d
    if total % 128 == 0:
        return total // 128, 128
    return seq, d  # fallback: correct, just not lane-dense


_TARGET_TILE_BYTES = 2 * 1024 * 1024  # ~2 MiB blocks: near HBM roofline,
                                      # 3 operands double-buffered fit 16 MiB.


def _choose_tiles(batch: int, rows: int, lane: int, itemsize: int):
    """Pick (tile_batch, tile_rows).  Rows are tiled first; if the whole
    (rows, lane) plane already fits the budget, pack several batch entries per
    block instead (fewer grid steps for short-sequence workloads)."""
    row_bytes = lane * itemsize
    plane_bytes = rows * row_bytes
    if plane_bytes <= _TARGET_TILE_BYTES:
        tr = rows
        tb = int(max(1, min(batch, _TARGET_TILE_BYTES // max(plane_bytes, 1))))
        return tb, tr
    align = max(8, 32 // itemsize)  # sublane packing: f32 -> 8, bf16 -> 16
    tr = (_TARGET_TILE_BYTES // row_bytes) // align * align
    tr = int(max(align, min(tr, rows)))
    return 1, tr


# ---------------------------------------------------------------------------
# Wrapper (forward pass of PositionalEncoding)
# ---------------------------------------------------------------------------
def positional_encoding(x, pe, *, dropout_rate: float = 0.1,
                        training: bool = False, seed: int = 0):
    """x: (batch, seq, d_model); pe: (max_len, d_model)."""
    batch, seq, d = x.shape
    assert pe.shape[0] >= seq and pe.shape[1] == d
    pe_slice = pe[:seq].astype(x.dtype)                    # (seq, d)

    if training and dropout_rate >= 1.0:
        # Dropout with p=1 zeroes everything (avoid inf scale).
        return jnp.zeros_like(x)
    use_dropout = training and dropout_rate > 0.0

    rows, lane = _fold_lane_dense(seq, d)
    x2 = x.reshape(batch, rows, lane)
    pe2 = pe_slice.reshape(rows, lane)

    itemsize = jnp.dtype(x.dtype).itemsize
    tb, tr = _choose_tiles(batch, rows, lane, itemsize)
    grid = (pl.cdiv(rows, tr), pl.cdiv(batch, tb))

    out_shape = jax.ShapeDtypeStruct((batch, rows, lane), x.dtype)
    # Row-tiles outer, batch inner: the PE block index only changes on the slow
    # axis, so PE is DMA'd once per row tile. Both axes are independent.
    cparams = pltpu.CompilerParams(
        dimension_semantics=("parallel", "parallel"))

    n_elem = batch * rows * lane
    cost = pl.CostEstimate(
        flops=2 * n_elem,                                    # add (+ mask/scale)
        transcendentals=0,
        bytes_accessed=(2 * n_elem + rows * lane) * itemsize)

    if not use_dropout:
        out2 = pl.pallas_call(
            _posenc_eval_kernel,
            out_shape=out_shape,
            grid_spec=pltpu.PrefetchScalarGridSpec(
                num_scalar_prefetch=0,
                grid=grid,
                in_specs=[pl.BlockSpec((tb, tr, lane), lambda s, b: (b, s, 0)),
                          pl.BlockSpec((tr, lane), lambda s, b: (s, 0))],
                out_specs=pl.BlockSpec((tb, tr, lane), lambda s, b: (b, s, 0)),
            ),
            compiler_params=cparams,
            cost_estimate=cost,
        )(x2, pe2)
        return out2.reshape(batch, seq, d)

    rate = float(dropout_rate)
    keep_threshold = min(int(rate * 4294967296.0), 4294967295)
    inv_keep = 1.0 / (1.0 - rate)
    seed_arr = jnp.array([seed], dtype=jnp.int32)

    kernel = functools.partial(
        _posenc_train_kernel,
        keep_threshold=keep_threshold, inv_keep=inv_keep,
        rows=rows, lane=lane, tile_rows=tr, tile_batch=tb)

    out2 = pl.pallas_call(
        kernel,
        out_shape=out_shape,
        grid_spec=pltpu.PrefetchScalarGridSpec(
            num_scalar_prefetch=1,   # seed lands in SMEM
            grid=grid,
            in_specs=[pl.BlockSpec((tb, tr, lane), lambda s, b, sd: (b, s, 0)),
                      pl.BlockSpec((tr, lane), lambda s, b, sd: (s, 0))],
            out_specs=pl.BlockSpec((tb, tr, lane), lambda s, b, sd: (b, s, 0)),
        ),
        compiler_params=cparams,
        cost_estimate=cost,
    )(seed_arr, x2, pe2)
    return out2.reshape(batch, seq, d)


# ---------------------------------------------------------------------------
# Main
# ---------------------------------------------------------------------------
if __name__ == "__main__":
    batch, seq, d_model = 2, 8, 32
    max_len = 64

    key = jax.random.PRNGKey(0)
    x = jax.random.normal(key, (batch, seq, d_model), dtype=jnp.float32)
    pe = make_sinusoidal_pe(d_model, max_len=max_len)

    # Eval-mode forward (dropout is identity), matching module.eval() semantics.
    out = positional_encoding(x, pe, dropout_rate=0.1, training=False)
    out = jax.block_until_ready(out)
    ref = x + pe[:seq][None, :, :]
    assert out.shape == (batch, seq, d_model)
    assert jnp.allclose(out, ref, atol=1e-6), "eval mismatch vs reference"

    # Training path: inverted dropout. Kept elements must equal (x+pe)/(1-rate).
    rate = 0.1
    out_train = positional_encoding(x, pe, dropout_rate=rate, training=True, seed=123)
    out_train = jax.block_until_ready(out_train)
    assert out_train.shape == (batch, seq, d_model)
    kept = out_train != 0
    expected = ref / (1.0 - rate)
    assert jnp.allclose(jnp.where(kept, out_train, 0.0),
                        jnp.where(kept, expected, 0.0), atol=1e-5), "train mismatch"
    assert bool(jnp.any(kept)), "dropout dropped everything (unexpected)"

    print("KERNEL_OK")
</pallas_src>

<mosaic_0001>
module attributes {stable_mosaic.version = 11 : i64} {
  func.func @_posenc_eval_kernel(%arg0: i32, %arg1: i32, %arg2: memref<2x2x128xf32, #tpu.memory_space<vmem>>, %arg3: memref<2x128xf32, #tpu.memory_space<vmem>>, %arg4: memref<2x2x128xf32, #tpu.memory_space<vmem>>) attributes {dimension_semantics = [#tpu.dimension_semantics<parallel>, #tpu.dimension_semantics<parallel>], iteration_bounds = array<i64: 1, 1>, scalar_prefetch = 0 : i64, scratch_operands = 0 : i64, tpu.core_type = #tpu.core_type<tc>, window_params = [{transform_indices = @transform_0, window_bounds = array<i64: 2, 2, 128>}, {transform_indices = @transform_1, window_bounds = array<i64: 2, 128>}, {transform_indices = @transform_2, window_bounds = array<i64: 2, 2, 128>}]} {
    %c0 = arith.constant 0 : index
    %c0_0 = arith.constant 0 : index
    %c0_1 = arith.constant 0 : index
    %0 = vector.load %arg2[%c0, %c0_0, %c0_1] : memref<2x2x128xf32, #tpu.memory_space<vmem>>, vector<2x2x128xf32>
    %c0_2 = arith.constant 0 : index
    %c0_3 = arith.constant 0 : index
    %1 = vector.load %arg3[%c0_2, %c0_3] : memref<2x128xf32, #tpu.memory_space<vmem>>, vector<2x128xf32>
    %2 = vector.shape_cast %1 : vector<2x128xf32> to vector<1x2x128xf32>
    %3 = vector.broadcast %2 : vector<1x2x128xf32> to vector<2x2x128xf32>
    %4 = arith.addf %0, %3 : vector<2x2x128xf32>
    %c0_4 = arith.constant 0 : index
    %c0_5 = arith.constant 0 : index
    %c0_6 = arith.constant 0 : index
    %5 = vector.load %arg4[%c0_4, %c0_5, %c0_6] : memref<2x2x128xf32, #tpu.memory_space<vmem>>, vector<2x2x128xf32>
    tpu.vector_store %arg4[%c0_4, %c0_5, %c0_6], %4 {strides = array<i32>} : memref<2x2x128xf32, #tpu.memory_space<vmem>>, vector<2x2x128xf32>,
    return
  }
  func.func @transform_0(%arg0: i32, %arg1: i32) -> (i32, i32, i32) {
    %c0_i32 = arith.constant 0 : i32
    %c0_i32_0 = arith.constant 0 : i32
    return %arg1, %arg0, %c0_i32 : i32, i32, i32
  }
  func.func @transform_1(%arg0: i32, %arg1: i32) -> (i32, i32) {
    %c0_i32 = arith.constant 0 : i32
    %c0_i32_0 = arith.constant 0 : i32
    return %arg0, %c0_i32 : i32, i32
  }
  func.func @transform_2(%arg0: i32, %arg1: i32) -> (i32, i32, i32) {
    %c0_i32 = arith.constant 0 : i32
    %c0_i32_0 = arith.constant 0 : i32
    return %arg1, %arg0, %c0_i32 : i32, i32, i32
  }
}

</mosaic_0001>

<llo_original>
// kernel: tpu_custom_call.1
$region0: #{tpu_custom_call.1}
  #allocation0 [shape = 'u32[]', space=smem, size = 0x4, offset = 0x4, fixed_abs, tag = 'smem constant byte address 0x4 - core index']
  #allocation1 [shape = 'u32[144,128]{1,0:T(1,128)}', space=vmem, size = 0x12000, scoped, tag = 'internal scratch']
  %s0 = inlined_call_operand.hbm [shape: f32[2,2,128], index: 0, kind: input, shape index: {}]
  %s1 = inlined_call_operand.vmem [shape: f32[2,128], index: 1, kind: input, shape index: {}]
  %s2 = inlined_call_operand.hbm [shape: f32[2,2,128], index: 2, kind: output, shape index: {}]
  %s3 = sld [smem:[#allocation0]]
  $region22: #{tpu_custom_call.1} parent=0
    _
  %s5 = ssub.s32 1, %s3
  %s6 = scalar_select 0, %s5, %s3
  $region1: #{tpu_custom_call.1} parent=0
    #allocation2 [shape = 'u8[2048]{0}', space=vmem, size = 0x800, scoped, tag = 'input window, operand 0, single buffered']
    #allocation3 [shape = 's32[1]{0}', space=sflag, size = 0x4, scoped, tag = 'scoped memory for tpu_custom_call.1']
    #allocation4 [shape = 's32[1]{0}', space=sflag, size = 0x4, scoped, tag = 'scoped memory for tpu_custom_call.1']
    #allocation5 [shape = 'u8[2048]{0}', space=vmem, size = 0x800, scoped, tag = 'output window, operand 0, single buffered']
    %7 = vsyncpa [#allocation3], 0
    %8 = vsyncpa [#allocation4], 0
    // Predicated region
    $region2: #{tpu_custom_call.1} parent=1 // pred_check
      _
    $region3: #{tpu_custom_call.1} parent=1 // pred_check_branch
      %10 = sbr.rel (0) target = $region5
    $region4: #{tpu_custom_call.1} parent=1 // pred_region
      %s12 = ssub.s32 64, 64
      %13 = vsyncadd [#allocation3], %s12
      %s14 = sshll.u32 [#allocation2], 4
      %s15 = int_to_ptr.vmem [resolvable:$true] %s14
      %20 = dma.hbm_to_vmem [thread:$0]  %s0, 64, %s15, [#allocation3], 32, 32, 2
    $region5: #{tpu_custom_call.1} parent=1 // pred_fallthru
      _
    // Predicated region
    $region6: #{tpu_custom_call.1} parent=1 // pred_check
      _
    $region7: #{tpu_custom_call.1} parent=1 // pred_check_branch
      %22 = sbr.rel (0) target = $region9
    $region8: #{tpu_custom_call.1} parent=1 // pred_region
      _
    $region9: #{tpu_custom_call.1} parent=1 // pred_fallthru
      _
    // Predicated region
    $region10: #{tpu_custom_call.1} parent=1 // pred_check
      _
    $region11: #{tpu_custom_call.1} parent=1 // pred_check_branch
      %24 = sbr.rel (0) target = $region13
    $region12: #{tpu_custom_call.1} parent=1 // pred_region
      %25 = dma.done [#allocation3], 64
    $region13: #{tpu_custom_call.1} parent=1 // pred_fallthru
      _
    %v26 = vld [vmem:[#allocation2] sm:$0x3]
    %v27 = vld [vmem:[#allocation2 + $0x2] sm:$0x3]
    %v28 = vld [vmem:[%s1] sm:$0x3]
    %v29 = vadd.f32 %v26, %v28
    %v30 = vadd.f32 %v27, %v28
    %31 = vst [vmem:[#allocation5] sm:$0x3] %v29
    %32 = vst [vmem:[#allocation5 + $0x2] sm:$0x3] %v30
    // Predicated region
    $region14: #{tpu_custom_call.1} parent=1 // pred_check
      _
    $region15: #{tpu_custom_call.1} parent=1 // pred_check_branch
      %34 = sbr.rel (0) target = $region17
    $region16: #{tpu_custom_call.1} parent=1 // pred_region
      %s36 = ssub.s32 64, 64
      %37 = vsyncadd [#allocation4], %s36
      %s38 = sshll.u32 [#allocation5], 4
      %s39 = int_to_ptr.vmem [resolvable:$true] %s38
      %44 = dma.vmem_to_hbm [thread:$0]  %s39, 64, %s2, [#allocation4], 32, 32, 2
    $region17: #{tpu_custom_call.1} parent=1 // pred_fallthru
      _
    // Predicated region
    $region18: #{tpu_custom_call.1} parent=1 // pred_check
      _
    $region19: #{tpu_custom_call.1} parent=1 // pred_check_branch
      %46 = sbr.rel (0) target = $region21
    $region20: #{tpu_custom_call.1} parent=1 // pred_region
      %47 = dma.done [#allocation4], 64
    $region21: #{tpu_custom_call.1} parent=1 // pred_fallthru
      _
    %48 = vsyncpa [#allocation3], 1
    %49 = vsyncpa [#allocation4], 1

</llo_original>
